<compile_context>
chip_gen: v7x
topology: tpu7x:2x2x1
jax: 0.10.0
libtpu: 0.0.40
codegen_flags: <defaults>
</compile_context>

<pallas_src>
import jax
import jax.numpy as jnp
from jax import lax
from jax.experimental import pallas as pl
from jax.experimental.pallas import tpu as pltpu

BN_EPS = 1e-5  # nn.BatchNorm1d default


def _round_up(x, m):
    return (x + m - 1) // m * m


def fc_last_kernel(x_ref, wt_ref, shift_ref, o_ref, acc_ref):
    # x_ref:     [tm, tk]   activation tile (compute dtype, e.g. bf16)
    # wt_ref:    [tk, tn]   scale-folded, pre-transposed weight tile ([Din, Dout] layout)
    # shift_ref: [1, tn]    beta + (bias - running_mean) * scale   (bias if no BN)
    # o_ref:     [tm, tn]   output tile
    # acc_ref:   [tm, tn]   f32 accumulator scratch (persists across K steps)
    k = pl.program_id(2)

    @pl.when(k == 0)
    def _():
        acc_ref[...] = jnp.zeros_like(acc_ref)

    # Standard [tm,tk] x [tk,tn] contraction on the MXU, f32 accumulation.
    acc_ref[...] += jnp.dot(x_ref[...], wt_ref[...],
                            preferred_element_type=jnp.float32)

    @pl.when(k == pl.num_programs(2) - 1)
    def _():
        # Fused Linear-bias + BatchNorm1d(eval) epilogue (scale already folded into W);
        # Dropout(eval) is identity.  Epilogue math stays in f32 (v5e VPU has no bf16).
        o_ref[...] = (acc_ref[...] + shift_ref[...]).astype(o_ref.dtype)


def fc_last_layer(x, W, b, gamma=None, beta=None, running_mean=None,
                  running_var=None, *, batch_norm=True, dropout_p=0.0,
                  compute_dtype=jnp.bfloat16, tm=256, tn=1024, tk=2048):
    """Forward pass of FCLastLayer (eval mode).

    x: [B, Din], W: [Dout, Din] (PyTorch nn.Linear layout), b: [Dout].
    """
    del dropout_p  # eval-mode Dropout is identity
    B, Din = x.shape
    Dout, _ = W.shape
    out_dtype = x.dtype

    # ---- Fold Linear bias + eval-mode BatchNorm into (scale, shift), fold scale into W. ----
    b32 = b.astype(jnp.float32)
    if batch_norm:
        inv_std = lax.rsqrt(running_var.astype(jnp.float32) + BN_EPS)
        scale = gamma.astype(jnp.float32) * inv_std
        shift = beta.astype(jnp.float32) + (b32 - running_mean.astype(jnp.float32)) * scale
    else:
        scale = jnp.ones((Dout,), jnp.float32)
        shift = b32

    # One-time (weights/BN stats are static in eval mode) weight prep:
    # transpose to [Din, Dout] so Dout sits on lanes, and fold the BN scale in.
    Wt = W.astype(jnp.float32).T * scale[None, :]          # [Din, Dout], f32

    # ---- Tile selection (block dims must be multiples of (8,128) or equal the full dim). ----
    tm = B    if B    <= tm else tm      # tm default is a multiple of 8
    tn = Dout if Dout <= tn else tn      # tn default is a multiple of 128
    if Din <= tk:
        tk, Kp = Din, Din                # single K step, no K padding needed
    else:
        Kp = _round_up(Din, tk)          # tk is a multiple of 128; zero-pad K below

    grid_m, grid_n = pl.cdiv(B, tm), pl.cdiv(Dout, tn)

    # v7x has 2 TensorCores: make sure at least one "parallel" axis has extent > 1
    # when the problem allows it (harmless on v5e/v6e).
    if grid_m == 1 and grid_n == 1:
        if Dout >= 256:
            tn = _round_up(pl.cdiv(Dout, 2), 128)
            grid_n = pl.cdiv(Dout, tn)
        elif B >= 16:
            tm = _round_up(pl.cdiv(B, 2), 8)
            grid_m = pl.cdiv(B, tm)

    # ---- K padding only (M/N handled by partial trailing blocks / OOB-write discard). ----
    if Kp != Din:
        x = jnp.pad(x, ((0, 0), (0, Kp - Din)))
        Wt = jnp.pad(Wt, ((0, Kp - Din), (0, 0)))
    grid_k = Kp // tk

    # bf16 (default) compute path: native MXU rate + half the x/W HBM traffic. f32 accum.
    if compute_dtype is not None and x.dtype != compute_dtype:
        x = x.astype(compute_dtype)
    if compute_dtype is not None and Wt.dtype != compute_dtype:
        Wt = Wt.astype(compute_dtype)

    shift2 = shift.reshape(1, Dout)
    grid = (grid_m, grid_n, grid_k)

    # ---- VMEM budget: double-buffered inputs/outputs + accumulator, capped for v7x (64 MiB). ----
    c_isz = jnp.dtype(x.dtype).itemsize
    o_isz = jnp.dtype(out_dtype).itemsize
    need = (2 * (tm * tk * c_isz + tk * tn * c_isz + tn * 4)
            + 2 * tm * tn * o_isz + tm * tn * 4)
    vmem_limit = int(min(64 * 1024 * 1024, max(32 * 1024 * 1024, need * 3 // 2)))

    # Cost estimate including re-streaming implied by the grid (x read grid_n times, W grid_m).
    cost = pl.CostEstimate(
        flops=2 * B * Kp * Dout,
        transcendentals=0,
        bytes_accessed=(grid_n * B * Kp * c_isz
                        + grid_m * Kp * Dout * c_isz
                        + B * Dout * o_isz
                        + grid_m * Dout * 4))

    out = pl.pallas_call(
        fc_last_kernel,
        out_shape=jax.ShapeDtypeStruct((B, Dout), out_dtype),
        grid_spec=pltpu.PrefetchScalarGridSpec(
            num_scalar_prefetch=0,
            grid=grid,
            in_specs=[
                pl.BlockSpec((tm, tk), lambda i, j, k: (i, k)),   # x tile
                pl.BlockSpec((tk, tn), lambda i, j, k: (k, j)),   # W.T tile (scale folded)
                pl.BlockSpec((1, tn), lambda i, j, k: (0, j)),    # shift
            ],
            out_specs=pl.BlockSpec((tm, tn), lambda i, j, k: (i, j)),
            scratch_shapes=[pltpu.VMEM((tm, tn), jnp.float32)],
        ),
        compiler_params=pltpu.CompilerParams(
            dimension_semantics=("parallel", "parallel", "arbitrary"),
            vmem_limit_bytes=vmem_limit),
        cost_estimate=cost,
    )(x, Wt, shift2)

    return out


def _reference(x, W, b, gamma, beta, rm, rv, batch_norm=True):
    y = x @ W.T + b
    if batch_norm:
        y = (y - rm) / jnp.sqrt(rv + BN_EPS) * gamma + beta
    return y  # eval-mode Dropout is identity; FCLastLayer has no activation


if __name__ == "__main__":
    key = jax.random.PRNGKey(0)
    B, dims_in, dims_out = 8, 32, 64
    dropout = 0.1

    k_x, k_w, k_b, k_g, k_bt, k_rm, k_rv = jax.random.split(key, 7)
    x = jax.random.normal(k_x, (B, dims_in), jnp.float32)

    # nn.Linear default init: U(-1/sqrt(dims_in), 1/sqrt(dims_in))
    bound = 1.0 / jnp.sqrt(jnp.float32(dims_in))
    W = jax.random.uniform(k_w, (dims_out, dims_in), jnp.float32, -bound, bound)
    b = jax.random.uniform(k_b, (dims_out,), jnp.float32, -bound, bound)

    # BatchNorm1d running stats / affine (perturbed so BN is actually exercised)
    gamma = 1.0 + 0.1 * jax.random.normal(k_g, (dims_out,), jnp.float32)
    beta = 0.1 * jax.random.normal(k_bt, (dims_out,), jnp.float32)
    running_mean = 0.1 * jax.random.normal(k_rm, (dims_out,), jnp.float32)
    running_var = 1.0 + 0.1 * jax.random.uniform(k_rv, (dims_out,), jnp.float32)

    ref_bn = _reference(x, W, b, gamma, beta, running_mean, running_var, batch_norm=True)
    ref_nb = _reference(x, W, b, gamma, beta, running_mean, running_var, batch_norm=False)

    # Exact (f32 compute) path — tight tolerance.
    out_f32 = fc_last_layer(x, W, b, gamma, beta, running_mean, running_var,
                            batch_norm=True, dropout_p=dropout,
                            compute_dtype=jnp.float32)
    out_f32 = jax.block_until_ready(out_f32)
    assert out_f32.shape == (B, dims_out)
    assert out_f32.dtype == x.dtype
    assert jnp.allclose(out_f32, ref_bn, atol=1e-4, rtol=1e-4)

    # Default bf16 compute path (f32 accumulation) — bf16-appropriate tolerance.
    out_bf16 = fc_last_layer(x, W, b, gamma, beta, running_mean, running_var,
                             batch_norm=True, dropout_p=dropout)
    out_bf16 = jax.block_until_ready(out_bf16)
    assert jnp.allclose(out_bf16, ref_bn, atol=2e-2, rtol=2e-2)

    # Without BatchNorm (bias only), bf16 default path.
    out_nb = fc_last_layer(x, W, b, batch_norm=False, dropout_p=dropout)
    out_nb = jax.block_until_ready(out_nb)
    assert jnp.allclose(out_nb, ref_nb, atol=2e-2, rtol=2e-2)

    print("KERNEL_OK")
</pallas_src>

<mosaic_0001>
module attributes {stable_mosaic.version = 11 : i64} {
  func.func @fc_last_kernel(%arg0: i32, %arg1: i32, %arg2: i32, %arg3: memref<8x32xf32, #tpu.memory_space<vmem>>, %arg4: memref<32x64xf32, #tpu.memory_space<vmem>>, %arg5: memref<1x64xf32, #tpu.memory_space<vmem>>, %arg6: memref<8x64xf32, #tpu.memory_space<vmem>>, %arg7: memref<8x64xf32, #tpu.memory_space<vmem>>) attributes {dimension_semantics = [#tpu.dimension_semantics<parallel>, #tpu.dimension_semantics<parallel>, #tpu.dimension_semantics<arbitrary>], iteration_bounds = array<i64: 1, 1, 1>, scalar_prefetch = 0 : i64, scratch_operands = 1 : i64, tpu.core_type = #tpu.core_type<tc>, window_params = [{transform_indices = @transform_0, window_bounds = array<i64: 8, 32>}, {transform_indices = @transform_1, window_bounds = array<i64: 32, 64>}, {transform_indices = @transform_2, window_bounds = array<i64: 1, 64>}, {transform_indices = @transform_3, window_bounds = array<i64: 8, 64>}]} {
    %c0_i32 = arith.constant 0 : i32
    %0 = arith.cmpi eq, %arg2, %c0_i32 : i32
    %1 = arith.extui %0 : i1 to i32
    %c0_i32_0 = arith.constant 0 : i32
    %2 = arith.cmpi ne, %1, %c0_i32_0 : i32
    scf.if %2 {
      %cst_10 = arith.constant 0.000000e+00 : f32
      %12 = vector.broadcast %cst_10 : f32 to vector<8x64xf32>
      %c0_11 = arith.constant 0 : index
      %c0_12 = arith.constant 0 : index
      %13 = vector.load %arg7[%c0_11, %c0_12] : memref<8x64xf32, #tpu.memory_space<vmem>>, vector<8x64xf32>
      tpu.vector_store %arg7[%c0_11, %c0_12], %12 {strides = array<i32>} : memref<8x64xf32, #tpu.memory_space<vmem>>, vector<8x64xf32>,
    } else {
    }
    %c0 = arith.constant 0 : index
    %c0_1 = arith.constant 0 : index
    %3 = vector.load %arg7[%c0, %c0_1] : memref<8x64xf32, #tpu.memory_space<vmem>>, vector<8x64xf32>
    %c0_2 = arith.constant 0 : index
    %c0_3 = arith.constant 0 : index
    %4 = vector.load %arg3[%c0_2, %c0_3] : memref<8x32xf32, #tpu.memory_space<vmem>>, vector<8x32xf32>
    %c0_4 = arith.constant 0 : index
    %c0_5 = arith.constant 0 : index
    %5 = vector.load %arg4[%c0_4, %c0_5] : memref<32x64xf32, #tpu.memory_space<vmem>>, vector<32x64xf32>
    %cst = arith.constant dense<0.000000e+00> : vector<8x64xf32>
    %6 = tpu.matmul %4, %5, %cst {dimension_numbers = #tpu.dot_dimension_numbers<[1], [0], [0], [1], [0, 0, 1, 1], [], []>} : vector<8x32xf32>, vector<32x64xf32>, vector<8x64xf32> -> vector<8x64xf32>
    %7 = arith.addf %3, %6 : vector<8x64xf32>
    %c0_6 = arith.constant 0 : index
    %c0_7 = arith.constant 0 : index
    %8 = vector.load %arg7[%c0_6, %c0_7] : memref<8x64xf32, #tpu.memory_space<vmem>>, vector<8x64xf32>
    tpu.vector_store %arg7[%c0_6, %c0_7], %7 {strides = array<i32>} : memref<8x64xf32, #tpu.memory_space<vmem>>, vector<8x64xf32>,
    %c0_i32_8 = arith.constant 0 : i32
    %9 = arith.cmpi eq, %arg2, %c0_i32_8 : i32
    %10 = arith.extui %9 : i1 to i32
    %c0_i32_9 = arith.constant 0 : i32
    %11 = arith.cmpi ne, %10, %c0_i32_9 : i32
    scf.if %11 {
      %c0_10 = arith.constant 0 : index
      %c0_11 = arith.constant 0 : index
      %12 = vector.load %arg7[%c0_10, %c0_11] : memref<8x64xf32, #tpu.memory_space<vmem>>, vector<8x64xf32>
      %c0_12 = arith.constant 0 : index
      %c0_13 = arith.constant 0 : index
      %13 = vector.load %arg5[%c0_12, %c0_13] : memref<1x64xf32, #tpu.memory_space<vmem>>, vector<1x64xf32>
      %14 = vector.broadcast %13 : vector<1x64xf32> to vector<8x64xf32>
      %15 = arith.addf %12, %14 : vector<8x64xf32>
      %c0_14 = arith.constant 0 : index
      %c0_15 = arith.constant 0 : index
      %16 = vector.load %arg6[%c0_14, %c0_15] : memref<8x64xf32, #tpu.memory_space<vmem>>, vector<8x64xf32>
      tpu.vector_store %arg6[%c0_14, %c0_15], %15 {strides = array<i32>} : memref<8x64xf32, #tpu.memory_space<vmem>>, vector<8x64xf32>,
    } else {
    }
    return
  }
  func.func @transform_0(%arg0: i32, %arg1: i32, %arg2: i32) -> (i32, i32) {
    %c0_i32 = arith.constant 0 : i32
    return %arg0, %arg2 : i32, i32
  }
  func.func @transform_1(%arg0: i32, %arg1: i32, %arg2: i32) -> (i32, i32) {
    %c0_i32 = arith.constant 0 : i32
    return %arg2, %arg1 : i32, i32
  }
  func.func @transform_2(%arg0: i32, %arg1: i32, %arg2: i32) -> (i32, i32) {
    %c0_i32 = arith.constant 0 : i32
    %c0_i32_0 = arith.constant 0 : i32
    return %c0_i32, %arg1 : i32, i32
  }
  func.func @transform_3(%arg0: i32, %arg1: i32, %arg2: i32) -> (i32, i32) {
    %c0_i32 = arith.constant 0 : i32
    return %arg0, %arg1 : i32, i32
  }
}

</mosaic_0001>

<llo_original>
// kernel: tpu_custom_call.1
$region0: #{tpu_custom_call.1}
  #allocation0 [shape = 'u32[]', space=smem, size = 0x4, offset = 0x4, fixed_abs, tag = 'smem constant byte address 0x4 - core index']
  #allocation1 [shape = 'u32[144,128]{1,0:T(1,128)}', space=vmem, size = 0x12000, scoped, tag = 'internal scratch']
  #allocation2 [shape = 'f32[8,64]{1,0:T(8,128)}', space=vmem, size = 0x1000, scoped, tag = 'scratch operand']
  %s0 = inlined_call_operand.hbm [shape: f32[8,32], index: 0, kind: input, shape index: {}]
  %s1 = inlined_call_operand.hbm [shape: f32[32,64], index: 1, kind: input, shape index: {}]
  %s2 = inlined_call_operand.vmem [shape: f32[1,64], index: 2, kind: input, shape index: {}]
  %s3 = inlined_call_operand.hbm [shape: f32[8,64], index: 3, kind: output, shape index: {}]
  %s4 = sld [smem:[#allocation0]]
  $region38: #{tpu_custom_call.1} parent=0
    _
  %s6 = ssub.s32 1, %s4
  %s7 = scalar_select 0, %s6, %s4
  $region1: #{tpu_custom_call.1} parent=0
    #allocation3 [shape = 'u8[4096]{0}', space=vmem, size = 0x1000, scoped, tag = 'input window, operand 0, single buffered']
    #allocation4 [shape = 's32[1]{0}', space=sflag, size = 0x4, scoped, tag = 'scoped memory for tpu_custom_call.1']
    #allocation5 [shape = 's32[1]{0}', space=sflag, size = 0x4, scoped, tag = 'scoped memory for tpu_custom_call.1']
    #allocation6 [shape = 'u8[16384]{0}', space=vmem, size = 0x4000, scoped, tag = 'input window, operand 1, single buffered']
    #allocation7 [shape = 's32[1]{0}', space=sflag, size = 0x4, scoped, tag = 'scoped memory for tpu_custom_call.1']
    #allocation8 [shape = 'u8[4096]{0}', space=vmem, size = 0x1000, scoped, tag = 'output window, operand 0, single buffered']
    %8 = vsyncpa [#allocation4], 0
    %9 = vsyncpa [#allocation7], 0
    %10 = vsyncpa [#allocation5], 0
    // Predicated region
    $region2: #{tpu_custom_call.1} parent=1 // pred_check
      _
    $region3: #{tpu_custom_call.1} parent=1 // pred_check_branch
      %12 = sbr.rel (0) target = $region5
    $region4: #{tpu_custom_call.1} parent=1 // pred_region
      %s14 = ssub.s32 128, 128
      %15 = vsyncadd [#allocation4], %s14
      %s17 = sshll.u32 [#allocation3], 4
      %s18 = int_to_ptr.vmem [resolvable:$true] %s17
      %20 = dma.hbm_to_vmem [thread:$0]  %s0, 128, %s18, [#allocation4]
    $region5: #{tpu_custom_call.1} parent=1 // pred_fallthru
      _
    // Predicated region
    $region6: #{tpu_custom_call.1} parent=1 // pred_check
      _
    $region7: #{tpu_custom_call.1} parent=1 // pred_check_branch
      %22 = sbr.rel (0) target = $region9
    $region8: #{tpu_custom_call.1} parent=1 // pred_region
      %s24 = ssub.s32 512, 512
      %25 = vsyncadd [#allocation7], %s24
      %s26 = sshll.u32 [#allocation6], 4
      %s27 = int_to_ptr.vmem [resolvable:$true] %s26
      %32 = dma.hbm_to_vmem [thread:$0]  %s1, 512, %s27, [#allocation7], 128, 128, 8
    $region9: #{tpu_custom_call.1} parent=1 // pred_fallthru
      _
    // Predicated region
    $region10: #{tpu_custom_call.1} parent=1 // pred_check
      _
    $region11: #{tpu_custom_call.1} parent=1 // pred_check_branch
      %34 = sbr.rel (0) target = $region13
    $region12: #{tpu_custom_call.1} parent=1 // pred_region
      _
    $region13: #{tpu_custom_call.1} parent=1 // pred_fallthru
      _
    // Predicated region
    $region14: #{tpu_custom_call.1} parent=1 // pred_check
      _
    $region15: #{tpu_custom_call.1} parent=1 // pred_check_branch
      %36 = sbr.rel (0) target = $region17
    $region16: #{tpu_custom_call.1} parent=1 // pred_region
      %37 = dma.done [#allocation4], 128
    $region17: #{tpu_custom_call.1} parent=1 // pred_fallthru
      _
    // Predicated region
    $region18: #{tpu_custom_call.1} parent=1 // pred_check
      _
    $region19: #{tpu_custom_call.1} parent=1 // pred_check_branch
      %39 = sbr.rel (0) target = $region21
    $region20: #{tpu_custom_call.1} parent=1 // pred_region
      %40 = dma.done [#allocation7], 512
    $region21: #{tpu_custom_call.1} parent=1 // pred_fallthru
      _
    %p41 = scmp.eq.s32.totalorder 0, 0
    // Predicated region
    $region22: #{tpu_custom_call.1} parent=1 // pred_check
      %p42 = pneg %p41
    $region23: #{tpu_custom_call.1} parent=1 // pred_check_branch
      %44 = sbr.rel (%p42) target = $region25
    $region24: #{tpu_custom_call.1} parent=1 // pred_region
      %vm45 = vcmask 523264
      %46 = vst.msk [vmem:[#allocation2] sm:$0xff] %vm45, 0.0
    $region25: #{tpu_custom_call.1} parent=1 // pred_fallthru
      _
    %v47 = vld [vmem:[#allocation2] sm:$0xff]
    %v48 = vld [vmem:[#allocation3] sm:$0xff]
    %v49 = vld [vmem:[#allocation6] sm:$0xff]
    %v50 = vld [vmem:[#allocation6 + $0x8] sm:$0xff]
    %v51 = vld [vmem:[#allocation6 + $0x10] sm:$0xff]
    %v52 = vld [vmem:[#allocation6 + $0x18] sm:$0xff]
    %vm53 = vcmask 261120
    %v55 = vsel %vm53, %v48, 0
    %57 = vmatprep.subr.mxu0 0.0
    %58 = vmatpush1.msra.mxu0 %v49
    %59 = vmatprep.subr.mxu0 0.0
    %60 = vmatpush1.msra.mxu0 %v50
    %61 = vmatprep.subr.mxu0 0.0
    %62 = vmatpush1.msra.mxu0 %v51
    %63 = vmatprep.subr.mxu0 0.0
    %64 = vmatpush1.msra.mxu0 %v52
    %65 = vmatprep.subr.mxu0 0.0
    %66 = vmatpush1.msra.mxu0 0.0
    %67 = vmatprep.subr.mxu0 0.0
    %68 = vmatpush1.msra.mxu0 0.0
    %69 = vmatprep.subr.mxu0 0.0
    %70 = vmatpush1.msra.mxu0 0.0
    %71 = vmatprep.subr.mxu0 0.0
    %72 = vmatpush1.msra.mxu0 0.0
    %73 = vmatprep.subr.mxu0 0.0
    %74 = vmatpush1.msra.mxu0 0.0
    %75 = vmatprep.subr.mxu0 0.0
    %76 = vmatpush1.msra.mxu0 0.0
    %77 = vmatprep.subr.mxu0 0.0
    %78 = vmatpush1.msra.mxu0 0.0
    %79 = vmatprep.subr.mxu0 0.0
    %80 = vmatpush1.msra.mxu0 0.0
    %81 = vmatprep.subr.mxu0 0.0
    %82 = vmatpush1.msra.mxu0 0.0
    %83 = vmatprep.subr.mxu0 0.0
    %84 = vmatpush1.msra.mxu0 0.0
    %85 = vmatprep.subr.mxu0 0.0
    %86 = vmatpush1.msra.mxu0 0.0
    %87 = vmatprep.subr.mxu0 0.0
    %88 = vmatpush1.msra.mxu0 0.0
    %89 = vmatprep.subr.mxu0 0.0
    %90 = vmatpush1.msra.mxu0 0.0
    %91 = vmatprep.subr.mxu0 0.0
    %92 = vmatpush1.msra.mxu0 0.0
    %93 = vmatprep.subr.mxu0 0.0
    %94 = vmatpush1.msra.mxu0 0.0
    %95 = vmatprep.subr.mxu0 0.0
    %96 = vmatpush1.msra.mxu0 0.0
    %97 = vmatprep.subr.mxu0 0.0
    %98 = vmatpush1.msra.mxu0 0.0
    %99 = vmatprep.subr.mxu0 0.0
    %100 = vmatpush1.msra.mxu0 0.0
    %101 = vmatprep.subr.mxu0 0.0
    %102 = vmatpush1.msra.mxu0 0.0
    %103 = vmatprep.subr.mxu0 0.0
    %104 = vmatpush1.msra.mxu0 0.0
    %105 = vmatprep.subr.mxu0 0.0
    %106 = vmatpush1.msra.mxu0 0.0
    %107 = vmatprep.subr.mxu0 0.0
    %108 = vmatpush1.msra.mxu0 0.0
    %109 = vmatprep.subr.mxu0 0.0
    %110 = vmatpush1.msra.mxu0 0.0
    %111 = vmatprep.subr.mxu0 0.0
    %112 = vmatpush1.msra.mxu0 0.0
    %113 = vmatprep.subr.mxu0 0.0
    %114 = vmatpush1.msra.mxu0 0.0
    %115 = vmatprep.subr.mxu0 0.0
    %116 = vmatpush1.msra.mxu0 0.0
    %117 = vmatprep.subr.mxu0 0.0
    %118 = vmatpush1.msra.mxu0 0.0
    %119 = vmatprep.subr.mxu0 0.0
    %120 = vmatpush1.msra.mxu0 0.0
    %121 = vmatprep.mubr.f32.mxu0 0.0
    %122 = vmatmul.mubr.f32.gmra.mrb[0].mxu0 %v55
    %v123 = vpop.f32.mrb[0].mxu0
    %v124 = vadd.f32 0.0, %v123
    %v125 = vpop.f32.mrb[0].mxu0
    %126 = vdwg.mxu0
    %v127 = vadd.f32 %v47, %v124
    %vm128 = vcmask 523264
    %129 = vst.msk [vmem:[#allocation2] sm:$0xff] %vm128, %v127
    // Predicated region
    $region26: #{tpu_custom_call.1} parent=1 // pred_check
      %p130 = pneg %p41
    $region27: #{tpu_custom_call.1} parent=1 // pred_check_branch
      %132 = sbr.rel (%p130) target = $region29
    $region28: #{tpu_custom_call.1} parent=1 // pred_region
      %v133 = vld [vmem:[#allocation2] sm:$0xff]
      %v134 = vld [vmem:[%s2] sm:$0x1]
      %v136 = vlaneseq
      %v137 = vshrl.u32 %v136, 7
      %v138 = vsub.s32 0, %v137
      %v139 = vrot.slane %v134, %v138
      %v141 = vadd.f32 %v133, %v139
      %142 = vst.msk [vmem:[#allocation8] sm:$0xff] %vm128, %v141
    $region29: #{tpu_custom_call.1} parent=1 // pred_fallthru
      _
    // Predicated region
    $region30: #{tpu_custom_call.1} parent=1 // pred_check
      _
    $region31: #{tpu_custom_call.1} parent=1 // pred_check_branch
      %144 = sbr.rel (0) target = $region33
    $region32: #{tpu_custom_call.1} parent=1 // pred_region
      %s146 = ssub.s32 128, 128
      %147 = vsyncadd [#allocation5], %s146
      %s149 = sshll.u32 [#allocation8], 4
      %s150 = int_to_ptr.vmem [resolvable:$true] %s149
      %152 = dma.vmem_to_hbm [thread:$0]  %s150, 128, %s3, [#allocation5]
    $region33: #{tpu_custom_call.1} parent=1 // pred_fallthru
      _
    // Predicated region
    $region34: #{tpu_custom_call.1} parent=1 // pred_check
      _
    $region35: #{tpu_custom_call.1} parent=1 // pred_check_branch
      %154 = sbr.rel (0) target = $region37
    $region36: #{tpu_custom_call.1} parent=1 // pred_region
      %155 = dma.done [#allocation5], 128
    $region37: #{tpu_custom_call.1} parent=1 // pred_fallthru
      _
    %156 = vsyncpa [#allocation4], 1
    %157 = vsyncpa [#allocation7], 1
    %158 = vsyncpa [#allocation5], 1

</llo_original>
